<compile_context>
chip_gen: v6e
topology: v6e:2x2x1
jax: 0.10.0
libtpu: 0.0.40
codegen_flags: <defaults>
</compile_context>

<pallas_src>
import functools

import jax
import jax.numpy as jnp
from jax.experimental import pallas as pl
from jax.experimental.pallas import tpu as pltpu


def _round_up(a: int, b: int) -> int:
    return ((a + b - 1) // b) * b


def _pad2(a, rows: int, cols: int):
    return jnp.pad(a, ((0, rows - a.shape[0]), (0, cols - a.shape[1])))


# --------------------------------------------------------------------------------------
# Kernel 1: per-source-cell message  m = relu(relu(x @ We1) @ We2) @ Wc
# --------------------------------------------------------------------------------------
def encoder_kernel(x_ref, we1_ref, we2_ref, wc_ref, m_ref):
    h = jnp.dot(x_ref[...], we1_ref[...], preferred_element_type=jnp.float32)
    h = jnp.maximum(h, 0.0)
    h = jnp.dot(h.astype(jnp.bfloat16), we2_ref[...], preferred_element_type=jnp.float32)
    h = jnp.maximum(h, 0.0)  # F.relu(encoder(x)); dropout is identity in eval mode
    m = jnp.dot(h.astype(jnp.bfloat16), wc_ref[...], preferred_element_type=jnp.float32)
    m_ref[...] = m.astype(m_ref.dtype)


# --------------------------------------------------------------------------------------
# Kernel 2: y = relu((incidence @ m) * inv_rowsum); out = relu(relu(y @ Wd1) @ Wd2)
#           grid = (target tiles, source tiles); source axis last, accumulated in scratch
# --------------------------------------------------------------------------------------
def agg_decoder_kernel(inc_ref, m_ref, inv_ref, wd1_ref, wd2_ref, out_ref, acc_ref):
    k = pl.program_id(1)

    @pl.when(k == 0)
    def _():
        acc_ref[...] = jnp.zeros_like(acc_ref)

    acc_ref[...] += jnp.dot(inc_ref[...], m_ref[...], preferred_element_type=jnp.float32)

    @pl.when(k == pl.num_programs(1) - 1)
    def _():
        y = acc_ref[...] * inv_ref[...]          # aggr_norm (1 / neighborhood size)
        y = jnp.maximum(y, 0.0)                  # update_func='relu'
        z = jnp.dot(y.astype(jnp.bfloat16), wd1_ref[...],
                    preferred_element_type=jnp.float32)
        z = jnp.maximum(z, 0.0)
        z = jnp.dot(z.astype(jnp.bfloat16), wd2_ref[...],
                    preferred_element_type=jnp.float32)
        z = jnp.maximum(z, 0.0)                  # F.relu(decoder(y))
        out_ref[...] = z.astype(out_ref.dtype)


@jax.jit
def allset_block(x, incidence, we1, we2, wc, wd1, wd2):
    n_src, c_in = x.shape
    m_tgt = incidence.shape[0]
    h_out = wc.shape[1]

    # ---- lane-dense padded sizes -------------------------------------------------------
    cp = _round_up(c_in, 128)
    hp = _round_up(h_out, 128)
    tk = 1024 if n_src >= 1024 else _round_up(n_src, 128)   # source-axis tile
    np_ = _round_up(n_src, tk)
    tm = 512 if m_tgt >= 512 else _round_up(m_tgt, 16)      # target-row tile (bf16 sublane-safe)
    mp = _round_up(m_tgt, tm)

    # ---- precompute 1/rowsum over the FULL (un-tiled) incidence, guarded vs empty rows --
    # (PyTorch would produce inf/NaN for empty target cells; the guard only touches those)
    row_sum = jnp.sum(incidence.astype(jnp.float32), axis=1, keepdims=True)
    inv_rowsum = 1.0 / jnp.maximum(row_sum, 1.0)

    # ---- pad + cast (binary incidence is exact in bf16; zero padding contributes nothing)
    xp = _pad2(x, np_, cp).astype(jnp.bfloat16)
    incp = _pad2(incidence, mp, np_).astype(jnp.bfloat16)
    invp = _pad2(inv_rowsum, mp, 1).astype(jnp.float32)
    we1p = _pad2(we1, cp, hp).astype(jnp.bfloat16)
    we2p = _pad2(we2, hp, hp).astype(jnp.bfloat16)
    wcp = _pad2(wc, hp, hp).astype(jnp.bfloat16)
    wd1p = _pad2(wd1, hp, hp).astype(jnp.bfloat16)
    wd2p = _pad2(wd2, hp, hp).astype(jnp.bfloat16)

    vmem_limit = 48 << 20  # fits v7x's 64 MiB physical VMEM with headroom; >> default scoped

    # ---- kernel 1: message per source tile (computed once, not per target tile) ---------
    msg = pl.pallas_call(
        encoder_kernel,
        out_shape=jax.ShapeDtypeStruct((np_, hp), jnp.bfloat16),
        grid_spec=pltpu.PrefetchScalarGridSpec(
            num_scalar_prefetch=0,
            grid=(np_ // tk,),
            in_specs=[
                pl.BlockSpec((tk, cp), lambda i: (i, 0)),
                pl.BlockSpec((cp, hp), lambda i: (0, 0)),   # weights: constant -> resident
                pl.BlockSpec((hp, hp), lambda i: (0, 0)),
                pl.BlockSpec((hp, hp), lambda i: (0, 0)),
            ],
            out_specs=pl.BlockSpec((tk, hp), lambda i: (i, 0)),
        ),
        compiler_params=pltpu.CompilerParams(
            dimension_semantics=("parallel",),
            vmem_limit_bytes=vmem_limit,
        ),
    )(xp, we1p, we2p, wcp)

    # ---- kernel 2: aggregate over source tiles + normalize + decoder epilogue -----------
    out_padded = pl.pallas_call(
        agg_decoder_kernel,
        out_shape=jax.ShapeDtypeStruct((mp, hp), jnp.float32),
        grid_spec=pltpu.PrefetchScalarGridSpec(
            num_scalar_prefetch=0,
            grid=(mp // tm, np_ // tk),
            in_specs=[
                pl.BlockSpec((tm, tk), lambda i, k: (i, k)),   # incidence tile (dominant bytes)
                pl.BlockSpec((tk, hp), lambda i, k: (k, 0)),   # message tile
                pl.BlockSpec((tm, 1), lambda i, k: (i, 0)),    # precomputed 1/rowsum
                pl.BlockSpec((hp, hp), lambda i, k: (0, 0)),   # decoder weights: resident
                pl.BlockSpec((hp, hp), lambda i, k: (0, 0)),
            ],
            out_specs=pl.BlockSpec((tm, hp), lambda i, k: (i, 0)),
            scratch_shapes=[pltpu.VMEM((tm, hp), jnp.float32)],
        ),
        compiler_params=pltpu.CompilerParams(
            dimension_semantics=("parallel", "arbitrary"),
            vmem_limit_bytes=vmem_limit,
        ),
    )(incp, msg, invp, wd1p, wd2p)

    return out_padded[:m_tgt, :h_out]


# --------------------------------------------------------------------------------------
# Pure-JAX f32 reference (mirrors the PyTorch module in eval mode)
# --------------------------------------------------------------------------------------
def allset_block_ref(x, incidence, we1, we2, wc, wd1, wd2):
    h = jnp.maximum(jnp.maximum(x @ we1, 0.0) @ we2, 0.0)
    row_sum = jnp.sum(incidence, axis=1, keepdims=True)
    y = (incidence @ (h @ wc)) / row_sum
    y = jnp.maximum(y, 0.0)
    z = jnp.maximum(jnp.maximum(y @ wd1, 0.0) @ wd2, 0.0)
    return z


if __name__ == "__main__":
    in_channels = 8
    hidden_channels = 32
    num_src = 32   # source cells (e.g. nodes)
    num_tgt = 16   # target cells (e.g. hyperedges)

    key = jax.random.PRNGKey(0)
    k_x, k_inc, k1, k2, k3, k4, k5 = jax.random.split(key, 7)

    x = jax.random.normal(k_x, (num_src, in_channels), dtype=jnp.float32)

    # dense binary incidence (torch.sparse densified); every row has at least one nonzero
    inc = (jax.random.uniform(k_inc, (num_tgt, num_src)) < 0.3).astype(jnp.float32)
    inc = inc.at[:, 0].set(1.0)

    def init_w(k, fan_in, fan_out):
        bound = 1.0 / jnp.sqrt(fan_in)
        return jax.random.uniform(k, (fan_in, fan_out), minval=-bound, maxval=bound,
                                  dtype=jnp.float32)

    we1 = init_w(k1, in_channels, hidden_channels)      # encoder layer 1
    we2 = init_w(k2, hidden_channels, hidden_channels)  # encoder layer 2
    wc = init_w(k3, hidden_channels, hidden_channels)   # Conv weight
    wd1 = init_w(k4, hidden_channels, hidden_channels)  # decoder layer 1
    wd2 = init_w(k5, hidden_channels, hidden_channels)  # decoder layer 2

    out = allset_block(x, inc, we1, we2, wc, wd1, wd2)
    out = jax.block_until_ready(out)

    ref = allset_block_ref(x, inc, we1, we2, wc, wd1, wd2)
    assert out.shape == (num_tgt, hidden_channels)
    # bf16 storage for incidence/message/weights (f32 accumulation) -> loosened tolerance
    assert jnp.allclose(out, ref, atol=3e-2, rtol=3e-2), "mismatch vs pure-JAX reference"

    print("KERNEL_OK")
</pallas_src>

<mosaic_0001>
module attributes {stable_mosaic.version = 11 : i64} {
  func.func @encoder_kernel(%arg0: i32, %arg1: memref<128x128xbf16, #tpu.memory_space<vmem>>, %arg2: memref<128x128xbf16, #tpu.memory_space<vmem>>, %arg3: memref<128x128xbf16, #tpu.memory_space<vmem>>, %arg4: memref<128x128xbf16, #tpu.memory_space<vmem>>, %arg5: memref<128x128xbf16, #tpu.memory_space<vmem>>) attributes {dimension_semantics = [#tpu.dimension_semantics<parallel>], iteration_bounds = array<i64: 1>, scalar_prefetch = 0 : i64, scratch_operands = 0 : i64, tpu.core_type = #tpu.core_type<tc>, window_params = [{transform_indices = @transform_0, window_bounds = array<i64: 128, 128>}, {pipeline_mode = #tpu.pipeline_mode<synchronous>, transform_indices = @transform_1, window_bounds = array<i64: 128, 128>}, {pipeline_mode = #tpu.pipeline_mode<synchronous>, transform_indices = @transform_2, window_bounds = array<i64: 128, 128>}, {pipeline_mode = #tpu.pipeline_mode<synchronous>, transform_indices = @transform_3, window_bounds = array<i64: 128, 128>}, {transform_indices = @transform_4, window_bounds = array<i64: 128, 128>}]} {
    %c0 = arith.constant 0 : index
    %c0_0 = arith.constant 0 : index
    %0 = vector.load %arg1[%c0, %c0_0] : memref<128x128xbf16, #tpu.memory_space<vmem>>, vector<128x128xbf16>
    %c0_1 = arith.constant 0 : index
    %c0_2 = arith.constant 0 : index
    %1 = vector.load %arg2[%c0_1, %c0_2] : memref<128x128xbf16, #tpu.memory_space<vmem>>, vector<128x128xbf16>
    %cst = arith.constant dense<0.000000e+00> : vector<128x128xf32>
    %2 = tpu.matmul %0, %1, %cst {dimension_numbers = #tpu.dot_dimension_numbers<[1], [0], [0], [1], [0, 0, 1, 1], [], []>} : vector<128x128xbf16>, vector<128x128xbf16>, vector<128x128xf32> -> vector<128x128xf32>
    %cst_3 = arith.constant 0.000000e+00 : f32
    %3 = vector.broadcast %cst_3 : f32 to vector<128x128xf32>
    %4 = arith.maximumf %2, %3 : vector<128x128xf32>
    %5 = arith.truncf %4 : vector<128x128xf32> to vector<128x128xbf16>
    %c0_4 = arith.constant 0 : index
    %c0_5 = arith.constant 0 : index
    %6 = vector.load %arg3[%c0_4, %c0_5] : memref<128x128xbf16, #tpu.memory_space<vmem>>, vector<128x128xbf16>
    %cst_6 = arith.constant dense<0.000000e+00> : vector<128x128xf32>
    %7 = tpu.matmul %5, %6, %cst_6 {dimension_numbers = #tpu.dot_dimension_numbers<[1], [0], [0], [1], [0, 0, 1, 1], [], []>} : vector<128x128xbf16>, vector<128x128xbf16>, vector<128x128xf32> -> vector<128x128xf32>
    %cst_7 = arith.constant 0.000000e+00 : f32
    %8 = vector.broadcast %cst_7 : f32 to vector<128x128xf32>
    %9 = arith.maximumf %7, %8 : vector<128x128xf32>
    %10 = arith.truncf %9 : vector<128x128xf32> to vector<128x128xbf16>
    %c0_8 = arith.constant 0 : index
    %c0_9 = arith.constant 0 : index
    %11 = vector.load %arg4[%c0_8, %c0_9] : memref<128x128xbf16, #tpu.memory_space<vmem>>, vector<128x128xbf16>
    %cst_10 = arith.constant dense<0.000000e+00> : vector<128x128xf32>
    %12 = tpu.matmul %10, %11, %cst_10 {dimension_numbers = #tpu.dot_dimension_numbers<[1], [0], [0], [1], [0, 0, 1, 1], [], []>} : vector<128x128xbf16>, vector<128x128xbf16>, vector<128x128xf32> -> vector<128x128xf32>
    %13 = arith.truncf %12 : vector<128x128xf32> to vector<128x128xbf16>
    %c0_11 = arith.constant 0 : index
    %c0_12 = arith.constant 0 : index
    %14 = vector.load %arg5[%c0_11, %c0_12] : memref<128x128xbf16, #tpu.memory_space<vmem>>, vector<128x128xbf16>
    tpu.vector_store %arg5[%c0_11, %c0_12], %13 {strides = array<i32>} : memref<128x128xbf16, #tpu.memory_space<vmem>>, vector<128x128xbf16>,
    return
  }
  func.func @transform_0(%arg0: i32) -> (i32, i32) {
    %c0_i32 = arith.constant 0 : i32
    %c0_i32_0 = arith.constant 0 : i32
    return %arg0, %c0_i32 : i32, i32
  }
  func.func @transform_1(%arg0: i32) -> (i32, i32) {
    %c0_i32 = arith.constant 0 : i32
    %c0_i32_0 = arith.constant 0 : i32
    %c0_i32_1 = arith.constant 0 : i32
    return %c0_i32, %c0_i32_0 : i32, i32
  }
  func.func @transform_2(%arg0: i32) -> (i32, i32) {
    %c0_i32 = arith.constant 0 : i32
    %c0_i32_0 = arith.constant 0 : i32
    %c0_i32_1 = arith.constant 0 : i32
    return %c0_i32, %c0_i32_0 : i32, i32
  }
  func.func @transform_3(%arg0: i32) -> (i32, i32) {
    %c0_i32 = arith.constant 0 : i32
    %c0_i32_0 = arith.constant 0 : i32
    %c0_i32_1 = arith.constant 0 : i32
    return %c0_i32, %c0_i32_0 : i32, i32
  }
  func.func @transform_4(%arg0: i32) -> (i32, i32) {
    %c0_i32 = arith.constant 0 : i32
    %c0_i32_0 = arith.constant 0 : i32
    return %arg0, %c0_i32 : i32, i32
  }
}

module attributes {stable_mosaic.version = 11 : i64} {
  func.func @agg_decoder_kernel(%arg0: i32, %arg1: i32, %arg2: memref<16x128xbf16, #tpu.memory_space<vmem>>, %arg3: memref<128x128xbf16, #tpu.memory_space<vmem>>, %arg4: memref<16x1xf32, #tpu.memory_space<vmem>>, %arg5: memref<128x128xbf16, #tpu.memory_space<vmem>>, %arg6: memref<128x128xbf16, #tpu.memory_space<vmem>>, %arg7: memref<16x128xf32, #tpu.memory_space<vmem>>, %arg8: memref<16x128xf32, #tpu.memory_space<vmem>>) attributes {dimension_semantics = [#tpu.dimension_semantics<parallel>, #tpu.dimension_semantics<arbitrary>], iteration_bounds = array<i64: 1, 1>, scalar_prefetch = 0 : i64, scratch_operands = 1 : i64, tpu.core_type = #tpu.core_type<tc>, window_params = [{transform_indices = @transform_0, window_bounds = array<i64: 16, 128>}, {transform_indices = @transform_1, window_bounds = array<i64: 128, 128>}, {transform_indices = @transform_2, window_bounds = array<i64: 16, 1>}, {pipeline_mode = #tpu.pipeline_mode<synchronous>, transform_indices = @transform_3, window_bounds = array<i64: 128, 128>}, {pipeline_mode = #tpu.pipeline_mode<synchronous>, transform_indices = @transform_4, window_bounds = array<i64: 128, 128>}, {transform_indices = @transform_5, window_bounds = array<i64: 16, 128>}]} {
    %c0_i32 = arith.constant 0 : i32
    %0 = arith.cmpi eq, %arg1, %c0_i32 : i32
    %1 = arith.extui %0 : i1 to i32
    %c0_i32_0 = arith.constant 0 : i32
    %2 = arith.cmpi ne, %1, %c0_i32_0 : i32
    scf.if %2 {
      %cst_10 = arith.constant 0.000000e+00 : f32
      %12 = vector.broadcast %cst_10 : f32 to vector<16x128xf32>
      %c0_11 = arith.constant 0 : index
      %c0_12 = arith.constant 0 : index
      %13 = vector.load %arg8[%c0_11, %c0_12] : memref<16x128xf32, #tpu.memory_space<vmem>>, vector<16x128xf32>
      tpu.vector_store %arg8[%c0_11, %c0_12], %12 {strides = array<i32>} : memref<16x128xf32, #tpu.memory_space<vmem>>, vector<16x128xf32>,
    } else {
    }
    %c0 = arith.constant 0 : index
    %c0_1 = arith.constant 0 : index
    %3 = vector.load %arg8[%c0, %c0_1] : memref<16x128xf32, #tpu.memory_space<vmem>>, vector<16x128xf32>
    %c0_2 = arith.constant 0 : index
    %c0_3 = arith.constant 0 : index
    %4 = vector.load %arg2[%c0_2, %c0_3] : memref<16x128xbf16, #tpu.memory_space<vmem>>, vector<16x128xbf16>
    %c0_4 = arith.constant 0 : index
    %c0_5 = arith.constant 0 : index
    %5 = vector.load %arg3[%c0_4, %c0_5] : memref<128x128xbf16, #tpu.memory_space<vmem>>, vector<128x128xbf16>
    %cst = arith.constant dense<0.000000e+00> : vector<16x128xf32>
    %6 = tpu.matmul %4, %5, %cst {dimension_numbers = #tpu.dot_dimension_numbers<[1], [0], [0], [1], [0, 0, 1, 1], [], []>} : vector<16x128xbf16>, vector<128x128xbf16>, vector<16x128xf32> -> vector<16x128xf32>
    %7 = arith.addf %3, %6 : vector<16x128xf32>
    %c0_6 = arith.constant 0 : index
    %c0_7 = arith.constant 0 : index
    %8 = vector.load %arg8[%c0_6, %c0_7] : memref<16x128xf32, #tpu.memory_space<vmem>>, vector<16x128xf32>
    tpu.vector_store %arg8[%c0_6, %c0_7], %7 {strides = array<i32>} : memref<16x128xf32, #tpu.memory_space<vmem>>, vector<16x128xf32>,
    %c0_i32_8 = arith.constant 0 : i32
    %9 = arith.cmpi eq, %arg1, %c0_i32_8 : i32
    %10 = arith.extui %9 : i1 to i32
    %c0_i32_9 = arith.constant 0 : i32
    %11 = arith.cmpi ne, %10, %c0_i32_9 : i32
    scf.if %11 {
      %c0_10 = arith.constant 0 : index
      %c0_11 = arith.constant 0 : index
      %12 = vector.load %arg8[%c0_10, %c0_11] : memref<16x128xf32, #tpu.memory_space<vmem>>, vector<16x128xf32>
      %c0_12 = arith.constant 0 : index
      %c0_13 = arith.constant 0 : index
      %13 = vector.load %arg4[%c0_12, %c0_13] : memref<16x1xf32, #tpu.memory_space<vmem>>, vector<16x1xf32>
      %14 = vector.broadcast %13 : vector<16x1xf32> to vector<16x128xf32>
      %15 = arith.mulf %12, %14 : vector<16x128xf32>
      %cst_14 = arith.constant 0.000000e+00 : f32
      %16 = vector.broadcast %cst_14 : f32 to vector<16x128xf32>
      %17 = arith.maximumf %15, %16 : vector<16x128xf32>
      %18 = arith.truncf %17 : vector<16x128xf32> to vector<16x128xbf16>
      %c0_15 = arith.constant 0 : index
      %c0_16 = arith.constant 0 : index
      %19 = vector.load %arg5[%c0_15, %c0_16] : memref<128x128xbf16, #tpu.memory_space<vmem>>, vector<128x128xbf16>
      %cst_17 = arith.constant dense<0.000000e+00> : vector<16x128xf32>
      %20 = tpu.matmul %18, %19, %cst_17 {dimension_numbers = #tpu.dot_dimension_numbers<[1], [0], [0], [1], [0, 0, 1, 1], [], []>} : vector<16x128xbf16>, vector<128x128xbf16>, vector<16x128xf32> -> vector<16x128xf32>
      %cst_18 = arith.constant 0.000000e+00 : f32
      %21 = vector.broadcast %cst_18 : f32 to vector<16x128xf32>
      %22 = arith.maximumf %20, %21 : vector<16x128xf32>
      %23 = arith.truncf %22 : vector<16x128xf32> to vector<16x128xbf16>
      %c0_19 = arith.constant 0 : index
      %c0_20 = arith.constant 0 : index
      %24 = vector.load %arg6[%c0_19, %c0_20] : memref<128x128xbf16, #tpu.memory_space<vmem>>, vector<128x128xbf16>
      %cst_21 = arith.constant dense<0.000000e+00> : vector<16x128xf32>
      %25 = tpu.matmul %23, %24, %cst_21 {dimension_numbers = #tpu.dot_dimension_numbers<[1], [0], [0], [1], [0, 0, 1, 1], [], []>} : vector<16x128xbf16>, vector<128x128xbf16>, vector<16x128xf32> -> vector<16x128xf32>
      %cst_22 = arith.constant 0.000000e+00 : f32
      %26 = vector.broadcast %cst_22 : f32 to vector<16x128xf32>
      %27 = arith.maximumf %25, %26 : vector<16x128xf32>
      %c0_23 = arith.constant 0 : index
      %c0_24 = arith.constant 0 : index
      %28 = vector.load %arg7[%c0_23, %c0_24] : memref<16x128xf32, #tpu.memory_space<vmem>>, vector<16x128xf32>
      tpu.vector_store %arg7[%c0_23, %c0_24], %27 {strides = array<i32>} : memref<16x128xf32, #tpu.memory_space<vmem>>, vector<16x128xf32>,
    } else {
    }
    return
  }
  func.func @transform_0(%arg0: i32, %arg1: i32) -> (i32, i32) {
    %c0_i32 = arith.constant 0 : i32
    return %arg0, %arg1 : i32, i32
  }
  func.func @transform_1(%arg0: i32, %arg1: i32) -> (i32, i32) {
    %c0_i32 = arith.constant 0 : i32
    %c0_i32_0 = arith.constant 0 : i32
    return %arg1, %c0_i32 : i32, i32
  }
  func.func @transform_2(%arg0: i32, %arg1: i32) -> (i32, i32) {
    %c0_i32 = arith.constant 0 : i32
    %c0_i32_0 = arith.constant 0 : i32
    return %arg0, %c0_i32 : i32, i32
  }
  func.func @transform_3(%arg0: i32, %arg1: i32) -> (i32, i32) {
    %c0_i32 = arith.constant 0 : i32
    %c0_i32_0 = arith.constant 0 : i32
    %c0_i32_1 = arith.constant 0 : i32
    return %c0_i32, %c0_i32_0 : i32, i32
  }
  func.func @transform_4(%arg0: i32, %arg1: i32) -> (i32, i32) {
    %c0_i32 = arith.constant 0 : i32
    %c0_i32_0 = arith.constant 0 : i32
    %c0_i32_1 = arith.constant 0 : i32
    return %c0_i32, %c0_i32_0 : i32, i32
  }
  func.func @transform_5(%arg0: i32, %arg1: i32) -> (i32, i32) {
    %c0_i32 = arith.constant 0 : i32
    %c0_i32_0 = arith.constant 0 : i32
    return %arg0, %c0_i32 : i32, i32
  }
}

</mosaic_0001>

<llo_original>
// kernel: allset_block.3
$region0: #{allset_block.3}
  #allocation0 [shape = 'u32[]', space=smem, size = 0x4, offset = 0x4, fixed_abs, tag = 'smem constant byte address 0x4 - core index']
  #allocation1 [shape = 'u32[144,128]{1,0:T(1,128)}', space=vmem, size = 0x12000, scoped, tag = 'internal scratch']
  #allocation2 [shape = 'f32[16,128]{1,0:T(8,128)}', space=vmem, size = 0x2000, scoped, tag = 'scratch operand']
  %s0 = inlined_call_operand.vmem [shape: bf16[16,128], index: 0, kind: input, shape index: {}]
  %s1 = inlined_call_operand.vmem [shape: bf16[128,128], index: 1, kind: input, shape index: {}]
  %s2 = inlined_call_operand.vmem [shape: f32[16,1], index: 2, kind: input, shape index: {}]
  %s3 = inlined_call_operand.vmem [shape: bf16[128,128], index: 3, kind: input, shape index: {}]
  %s4 = inlined_call_operand.vmem [shape: bf16[128,128], index: 4, kind: input, shape index: {}]
  %s5 = inlined_call_operand.hbm [shape: f32[16,128], index: 5, kind: output, shape index: {}]
  %s6 = sld [smem:[#allocation0]]
  $region38: #{allset_block.3} parent=0
    _
  %s8 = ssub.s32 1, %s6
  %s9 = scalar_select 0, %s8, %s6
  $region1: #{allset_block.3} parent=0
    #allocation3 [shape = 'u8[8192]{0}', space=vmem, size = 0x2000, scoped, tag = 'output window, operand 0, single buffered']
    #allocation4 [shape = 's32[1]{0}', space=sflag, size = 0x4, scoped, tag = 'scoped memory for allset_block.3']
    %10 = vsyncpa [#allocation4], 0
    // Predicated region
    $region2: #{allset_block.3} parent=1 // pred_check
      _
    $region3: #{allset_block.3} parent=1 // pred_check_branch
      %12 = sbr.rel (0) target = $region5
    $region4: #{allset_block.3} parent=1 // pred_region
      _
    $region5: #{allset_block.3} parent=1 // pred_fallthru
      _
    // Predicated region
    $region6: #{allset_block.3} parent=1 // pred_check
      _
    $region7: #{allset_block.3} parent=1 // pred_check_branch
      %14 = sbr.rel (0) target = $region9
    $region8: #{allset_block.3} parent=1 // pred_region
      _
    $region9: #{allset_block.3} parent=1 // pred_fallthru
      _
    // Predicated region
    $region10: #{allset_block.3} parent=1 // pred_check
      _
    $region11: #{allset_block.3} parent=1 // pred_check_branch
      %16 = sbr.rel (0) target = $region13
    $region12: #{allset_block.3} parent=1 // pred_region
      _
    $region13: #{allset_block.3} parent=1 // pred_fallthru
      _
    // Predicated region
    $region14: #{allset_block.3} parent=1 // pred_check
      _
    $region15: #{allset_block.3} parent=1 // pred_check_branch
      %18 = sbr.rel (0) target = $region17
    $region16: #{allset_block.3} parent=1 // pred_region
      _
    $region17: #{allset_block.3} parent=1 // pred_fallthru
      _
    // Predicated region
    $region18: #{allset_block.3} parent=1 // pred_check
      _
    $region19: #{allset_block.3} parent=1 // pred_check_branch
      %20 = sbr.rel (0) target = $region21
    $region20: #{allset_block.3} parent=1 // pred_region
      _
    $region21: #{allset_block.3} parent=1 // pred_fallthru
      _
    %p22 = scmp.eq.s32.totalorder 0, 0
    // Predicated region
    $region22: #{allset_block.3} parent=1 // pred_check
      %p23 = pneg %p22
    $region23: #{allset_block.3} parent=1 // pred_check_branch
      %25 = sbr.rel (%p23) target = $region25
    $region24: #{allset_block.3} parent=1 // pred_region
      %26 = vst [vmem:[#allocation2] sm:$0xff] 0.0
      %27 = vst [vmem:[#allocation2 + $0x8] sm:$0xff] 0.0
    $region25: #{allset_block.3} parent=1 // pred_fallthru
      _
    %v28 = vld [vmem:[#allocation2] sm:$0xff]
    %v29 = vld [vmem:[#allocation2 + $0x8] sm:$0xff]
    %v30 = vld [vmem:[%s0] sm:$0xf]
    %v31 = vld [vmem:[%s0 + $0x4] sm:$0xf]
    %v32 = vld [vmem:[%s1] sm:$0xf]
    %v33 = vld [vmem:[%s1 + $0x4] sm:$0xf]
    %v34 = vld [vmem:[%s1 + $0x8] sm:$0xf]
    %v35 = vld [vmem:[%s1 + $0xc] sm:$0xf]
    %v36 = vld [vmem:[%s1 + $0x10] sm:$0xf]
    %v37 = vld [vmem:[%s1 + $0x14] sm:$0xf]
    %v38 = vld [vmem:[%s1 + $0x18] sm:$0xf]
    %v39 = vld [vmem:[%s1 + $0x1c] sm:$0xf]
    %v40 = vld [vmem:[%s1 + $0x20] sm:$0xf]
    %v41 = vld [vmem:[%s1 + $0x24] sm:$0xf]
    %v42 = vld [vmem:[%s1 + $0x28] sm:$0xf]
    %v43 = vld [vmem:[%s1 + $0x2c] sm:$0xf]
    %v44 = vld [vmem:[%s1 + $0x30] sm:$0xf]
    %v45 = vld [vmem:[%s1 + $0x34] sm:$0xf]
    %v46 = vld [vmem:[%s1 + $0x38] sm:$0xf]
    %v47 = vld [vmem:[%s1 + $0x3c] sm:$0xf]
    %v50 = vunpack.c.l.b16 %v30
    %v51 = vunpack.c.l.b16 %v31
    %v52 = vpack.c.b16 %v51, %v50
    %v70 = vunpack.c.l.b16 %v32
    %v71 = vunpack.c.l.b16 %v33
    %v72 = vunpack.c.l.b16 %v34
    %v73 = vunpack.c.l.b16 %v35
    %v74 = vunpack.c.l.b16 %v36
    %v75 = vunpack.c.l.b16 %v37
    %v76 = vunpack.c.l.b16 %v38
    %v77 = vunpack.c.l.b16 %v39
    %v78 = vunpack.c.l.b16 %v40
    %v79 = vunpack.c.l.b16 %v41
    %v80 = vunpack.c.l.b16 %v42
    %v81 = vunpack.c.l.b16 %v43
    %v82 = vunpack.c.l.b16 %v44
    %v83 = vunpack.c.l.b16 %v45
    %v84 = vunpack.c.l.b16 %v46
    %v85 = vunpack.c.l.b16 %v47
    %v86 = vpack.c.b16 %v71, %v70
    %v87 = vpack.c.b16 %v73, %v72
    %v88 = vpack.c.b16 %v75, %v74
    %v89 = vpack.c.b16 %v77, %v76
    %v90 = vpack.c.b16 %v79, %v78
    %v91 = vpack.c.b16 %v81, %v80
    %v92 = vpack.c.b16 %v83, %v82
    %v93 = vpack.c.b16 %v85, %v84
    %102 = vmatprep.subr.bf16.mxu0 0
    %103 = vmatpush1.bf16.msra.mxu0 %v93
    %104 = vmatprep.subr.bf16.mxu0 0
    %105 = vmatpush1.bf16.msra.mxu0 %v92
    %106 = vmatprep.subr.bf16.mxu0 0
    %107 = vmatpush1.bf16.msra.mxu0 %v91
    %108 = vmatprep.subr.bf16.mxu0 0
    %109 = vmatpush1.bf16.msra.mxu0 %v90
    %110 = vmatprep.subr.bf16.mxu0 0
    %111 = vmatpush1.bf16.msra.mxu0 %v89
    %112 = vmatprep.subr.bf16.mxu0 0
    %113 = vmatpush1.bf16.msra.mxu0 %v88
    %114 = vmatprep.subr.bf16.mxu0 0
    %115 = vmatpush1.bf16.msra.mxu0 %v87
    %116 = vmatprep.subr.bf16.mxu0 0
    %117 = vmatpush1.bf16.msra.mxu0 %v86
    %118 = vmatprep.subr.bf16.mxu0 0
    %119 = vmatpush2.bf16.msra.mxu0 0
    %120 = vmatprep.subr.bf16.mxu0 0
    %121 = vmatpush2.bf16.msra.mxu0 0
    %122 = vmatprep.subr.bf16.mxu0 0
    %123 = vmatpush2.bf16.msra.mxu0 0
    %124 = vmatprep.subr.bf16.mxu0 0
    %125 = vmatpush2.bf16.msra.mxu0 0
    %126 = vmatprep.subr.bf16.mxu0 0
    %127 = vmatpush2.bf16.msra.mxu0 0
    %128 = vmatprep.subr.bf16.mxu0 0
    %129 = vmatpush2.bf16.msra.mxu0 0
    %130 = vmatprep.subr.bf16.mxu0 0
    %131 = vmatpush2.bf16.msra.mxu0 0
    %132 = vmatprep.subr.bf16.mxu0 0
    %133 = vmatpush2.bf16.msra.mxu0 0
    %134 = vmatprep.mubr.bf16.mxu0 0
    %135 = vmatmul.mubr.bf16.gmra.mxu0 %v52
    %v136 = vpop.f32.mrf.mxu0
    %v137 = vadd.f32 0.0, %v136
    %v138 = vpop.f32.mrf.mxu0
    %v139 = vpop.f32.mrf.mxu0
    %v140 = vadd.f32 0.0, %v139
    %v141 = vpop.f32.mrf.mxu0
    %142 = vdwg.mxu0
    %v143 = vadd.f32 %v28, %v137
    %v144 = vadd.f32 %v29, %v140
    %145 = vst [vmem:[#allocation2] sm:$0xff] %v143
    %146 = vst [vmem:[#allocation2 + $0x8] sm:$0xff] %v144
    // Predicated region
    $region26: #{allset_block.3} parent=1 // pred_check
      %p147 = pneg %p22
    $region27: #{allset_block.3} parent=1 // pred_check_branch
      %149 = sbr.rel (%p147) target = $region29
    $region28: #{allset_block.3} parent=1 // pred_region
      %v150 = vld [vmem:[#allocation2] sm:$0xff]
      %v151 = vld [vmem:[#allocation2 + $0x8] sm:$0xff]
      %v152 = vld [vmem:[%s2] sm:$0xff]
      %v153 = vld [vmem:[%s2 + $0x8] sm:$0xff]
      %155 = vset.pattern.permute.xlu0 0
      %156 = vperm.xlu0 %155, %v152
      %v157 = vpop.permute.xlu0 %156
      %160 = vset.pattern.permute.xlu0 0
      %161 = vperm.xlu0 %160, %v153
      %v162 = vpop.permute.xlu0 %161
      %v164 = vmul.f32 %v150, %v157
      %v165 = vmul.f32 %v151, %v162
      %v166 = vmax.f32 %v164, 0.0
      %v167 = vmax.f32 %v165, 0.0
      %v168 = vpack.c.bf16 %v167, %v166
      %v169 = vld [vmem:[%s3] sm:$0xf]
      %v170 = vld [vmem:[%s3 + $0x4] sm:$0xf]
      %v171 = vld [vmem:[%s3 + $0x8] sm:$0xf]
      %v172 = vld [vmem:[%s3 + $0xc] sm:$0xf]
      %v173 = vld [vmem:[%s3 + $0x10] sm:$0xf]
      %v174 = vld [vmem:[%s3 + $0x14] sm:$0xf]
      %v175 = vld [vmem:[%s3 + $0x18] sm:$0xf]
      %v176 = vld [vmem:[%s3 + $0x1c] sm:$0xf]
      %v177 = vld [vmem:[%s3 + $0x20] sm:$0xf]
      %v178 = vld [vmem:[%s3 + $0x24] sm:$0xf]
      %v179 = vld [vmem:[%s3 + $0x28] sm:$0xf]
      %v180 = vld [vmem:[%s3 + $0x2c] sm:$0xf]
      %v181 = vld [vmem:[%s3 + $0x30] sm:$0xf]
      %v182 = vld [vmem:[%s3 + $0x34] sm:$0xf]
      %v183 = vld [vmem:[%s3 + $0x38] sm:$0xf]
      %v184 = vld [vmem:[%s3 + $0x3c] sm:$0xf]
      %v201 = vunpack.c.l.b16 %v169
      %v202 = vunpack.c.l.b16 %v170
      %v203 = vunpack.c.l.b16 %v171
      %v204 = vunpack.c.l.b16 %v172
      %v205 = vunpack.c.l.b16 %v173
      %v206 = vunpack.c.l.b16 %v174
      %v207 = vunpack.c.l.b16 %v175
      %v208 = vunpack.c.l.b16 %v176
      %v209 = vunpack.c.l.b16 %v177
      %v210 = vunpack.c.l.b16 %v178
      %v211 = vunpack.c.l.b16 %v179
      %v212 = vunpack.c.l.b16 %v180
      %v213 = vunpack.c.l.b16 %v181
      %v214 = vunpack.c.l.b16 %v182
      %v215 = vunpack.c.l.b16 %v183
      %v216 = vunpack.c.l.b16 %v184
      %v217 = vpack.c.b16 %v202, %v201
      %v218 = vpack.c.b16 %v204, %v203
      %v219 = vpack.c.b16 %v206, %v205
      %v220 = vpack.c.b16 %v208, %v207
      %v221 = vpack.c.b16 %v210, %v209
      %v222 = vpack.c.b16 %v212, %v211
      %v223 = vpack.c.b16 %v214, %v213
      %v224 = vpack.c.b16 %v216, %v215
      %233 = vmatprep.subr.bf16.mxu0 0
      %234 = vmatpush1.bf16.msra.mxu0 %v224
      %235 = vmatprep.subr.bf16.mxu0 0
      %236 = vmatpush1.bf16.msra.mxu0 %v223
      %237 = vmatprep.subr.bf16.mxu0 0
      %238 = vmatpush1.bf16.msra.mxu0 %v222
      %239 = vmatprep.subr.bf16.mxu0 0
      %240 = vmatpush1.bf16.msra.mxu0 %v221
      %241 = vmatprep.subr.bf16.mxu0 0
      %242 = vmatpush1.bf16.msra.mxu0 %v220
      %243 = vmatprep.subr.bf16.mxu0 0
      %244 = vmatpush1.bf16.msra.mxu0 %v219
      %245 = vmatprep.subr.bf16.mxu0 0
      %246 = vmatpush1.bf16.msra.mxu0 %v218
      %247 = vmatprep.subr.bf16.mxu0 0
      %248 = vmatpush1.bf16.msra.mxu0 %v217
      %249 = vmatprep.subr.bf16.mxu0 0
      %250 = vmatpush2.bf16.msra.mxu0 0
      %251 = vmatprep.subr.bf16.mxu0 0
      %252 = vmatpush2.bf16.msra.mxu0 0
      %253 = vmatprep.subr.bf16.mxu0 0
      %254 = vmatpush2.bf16.msra.mxu0 0
      %255 = vmatprep.subr.bf16.mxu0 0
      %256 = vmatpush2.bf16.msra.mxu0 0
      %257 = vmatprep.subr.bf16.mxu0 0
      %258 = vmatpush2.bf16.msra.mxu0 0
      %259 = vmatprep.subr.bf16.mxu0 0
      %260 = vmatpush2.bf16.msra.mxu0 0
      %261 = vmatprep.subr.bf16.mxu0 0
      %262 = vmatpush2.bf16.msra.mxu0 0
      %263 = vmatprep.subr.bf16.mxu0 0
      %264 = vmatpush2.bf16.msra.mxu0 0
      %265 = vmatprep.mubr.bf16.mxu0 0
      %266 = vmatmul.mubr.bf16.gmra.mxu0 %v168
      %v267 = vpop.f32.mrf.mxu0
      %v268 = vadd.f32 0.0, %v267
      %v269 = vpop.f32.mrf.mxu0
      %v270 = vpop.f32.mrf.mxu0
      %v271 = vadd.f32 0.0, %v270
      %v272 = vpop.f32.mrf.mxu0
      %273 = vdwg.mxu0
      %v274 = vmax.f32 %v268, 0.0
      %v275 = vmax.f32 %v271, 0.0
      %v276 = vpack.c.bf16 %v275, %v274
      %v277 = vld [vmem:[%s4] sm:$0xf]
      %v278 = vld [vmem:[%s4 + $0x4] sm:$0xf]
      %v279 = vld [vmem:[%s4 + $0x8] sm:$0xf]
      %v280 = vld [vmem:[%s4 + $0xc] sm:$0xf]
      %v281 = vld [vmem:[%s4 + $0x10] sm:$0xf]
      %v282 = vld [vmem:[%s4 + $0x14] sm:$0xf]
      %v283 = vld [vmem:[%s4 + $0x18] sm:$0xf]
      %v284 = vld [vmem:[%s4 + $0x1c] sm:$0xf]
      %v285 = vld [vmem:[%s4 + $0x20] sm:$0xf]
      %v286 = vld [vmem:[%s4 + $0x24] sm:$0xf]
      %v287 = vld [vmem:[%s4 + $0x28] sm:$0xf]
      %v288 = vld [vmem:[%s4 + $0x2c] sm:$0xf]
      %v289 = vld [vmem:[%s4 + $0x30] sm:$0xf]
      %v290 = vld [vmem:[%s4 + $0x34] sm:$0xf]
      %v291 = vld [vmem:[%s4 + $0x38] sm:$0xf]
      %v292 = vld [vmem:[%s4 + $0x3c] sm:$0xf]
      %v309 = vunpack.c.l.b16 %v277
      %v310 = vunpack.c.l.b16 %v278
      %v311 = vunpack.c.l.b16 %v279
      %v312 = vunpack.c.l.b16 %v280
      %v313 = vunpack.c.l.b16 %v281
      %v314 = vunpack.c.l.b16 %v282
      %v315 = vunpack.c.l.b16 %v283
      %v316 = vunpack.c.l.b16 %v284
      %v317 = vunpack.c.l.b16 %v285
      %v318 = vunpack.c.l.b16 %v286
      %v319 = vunpack.c.l.b16 %v287
      %v320 = vunpack.c.l.b16 %v288
      %v321 = vunpack.c.l.b16 %v289
      %v322 = vunpack.c.l.b16 %v290
      %v323 = vunpack.c.l.b16 %v291
      %v324 = vunpack.c.l.b16 %v292
      %v325 = vpack.c.b16 %v310, %v309
      %v326 = vpack.c.b16 %v312, %v311
      %v327 = vpack.c.b16 %v314, %v313
      %v328 = vpack.c.b16 %v316, %v315
      %v329 = vpack.c.b16 %v318, %v317
      %v330 = vpack.c.b16 %v320, %v319
      %v331 = vpack.c.b16 %v322, %v321
      %v332 = vpack.c.b16 %v324, %v323
      %341 = vmatprep.subr.bf16.mxu0 0
      %342 = vmatpush1.bf16.msra.mxu0 %v332
      %343 = vmatprep.subr.bf16.mxu0 0
      %344 = vmatpush1.bf16.msra.mxu0 %v331
      %345 = vmatprep.subr.bf16.mxu0 0
      %346 = vmatpush1.bf16.msra.mxu0 %v330
      %347 = vmatprep.subr.bf16.mxu0 0
      %348 = vmatpush1.bf16.msra.mxu0 %v329
      %349 = vmatprep.subr.bf16.mxu0 0
      %350 = vmatpush1.bf16.msra.mxu0 %v328
      %351 = vmatprep.subr.bf16.mxu0 0
      %352 = vmatpush1.bf16.msra.mxu0 %v327
      %353 = vmatprep.subr.bf16.mxu0 0
      %354 = vmatpush1.bf16.msra.mxu0 %v326
      %355 = vmatprep.subr.bf16.mxu0 0
      %356 = vmatpush1.bf16.msra.mxu0 %v325
      %357 = vmatprep.subr.bf16.mxu0 0
      %358 = vmatpush2.bf16.msra.mxu0 0
      %359 = vmatprep.subr.bf16.mxu0 0
      %360 = vmatpush2.bf16.msra.mxu0 0
      %361 = vmatprep.subr.bf16.mxu0 0
      %362 = vmatpush2.bf16.msra.mxu0 0
      %363 = vmatprep.subr.bf16.mxu0 0
      %364 = vmatpush2.bf16.msra.mxu0 0
      %365 = vmatprep.subr.bf16.mxu0 0
      %366 = vmatpush2.bf16.msra.mxu0 0
      %367 = vmatprep.subr.bf16.mxu0 0
      %368 = vmatpush2.bf16.msra.mxu0 0
      %369 = vmatprep.subr.bf16.mxu0 0
      %370 = vmatpush2.bf16.msra.mxu0 0
      %371 = vmatprep.subr.bf16.mxu0 0
      %372 = vmatpush2.bf16.msra.mxu0 0
      %373 = vmatprep.mubr.bf16.mxu0 0
      %374 = vmatmul.mubr.bf16.gmra.mxu0 %v276
      %v375 = vpop.f32.mrf.mxu0
      %v376 = vadd.f32 0.0, %v375
      %v377 = vpop.f32.mrf.mxu0
      %v378 = vpop.f32.mrf.mxu0
      %v379 = vadd.f32 0.0, %v378
      %v380 = vpop.f32.mrf.mxu0
      %381 = vdwg.mxu0
      %v382 = vmax.f32 %v376, 0.0
      %v383 = vmax.f32 %v379, 0.0
      %384 = vst [vmem:[#allocation3] sm:$0xff] %v382
      %385 = vst [vmem:[#allocation3 + $0x8] sm:$0xff] %v383
    $region29: #{allset_block.3} parent=1 // pred_fallthru
      _
    // Predicated region
    $region30: #{allset_block.3} parent=1 // pred_check
      _
    $region31: #{allset_block.3} parent=1 // pred_check_branch
      %387 = sbr.rel (0) target = $region33
    $region32: #{allset_block.3} parent=1 // pred_region
      %s389 = ssub.s32 256, 256
      %390 = vsyncadd [#allocation4], %s389
      %s391 = sshll.u32 [#allocation3], 4
      %s392 = int_to_ptr.vmem [resolvable:$true] %s391
      %397 = dma.vmem_to_hbm [thread:$0]  %s392, 256, %s5, [#allocation4], 128, 128, 8
    $region33: #{allset_block.3} parent=1 // pred_fallthru
      _
    // Predicated region
    $region34: #{allset_block.3} parent=1 // pred_check
      _
    $region35: #{allset_block.3} parent=1 // pred_check_branch
      %399 = sbr.rel (0) target = $region37
    $region36: #{allset_block.3} parent=1 // pred_region
      %400 = dma.done [#allocation4], 256
    $region37: #{allset_block.3} parent=1 // pred_fallthru
      _
    %401 = vsyncpa [#allocation4], 1

// kernel: allset_block.2
$region0: #{allset_block.2}
  #allocation0 [shape = 'u32[]', space=smem, size = 0x4, offset = 0x4, fixed_abs, tag = 'smem constant byte address 0x4 - core index']
  #allocation1 [shape = 'u32[144,128]{1,0:T(1,128)}', space=vmem, size = 0x12000, scoped, tag = 'internal scratch']
  %s0 = inlined_call_operand.vmem [shape: bf16[128,128], index: 0, kind: input, shape index: {}]
  %s1 = inlined_call_operand.vmem [shape: bf16[128,128], index: 1, kind: input, shape index: {}]
  %s2 = inlined_call_operand.vmem [shape: bf16[128,128], index: 2, kind: input, shape index: {}]
  %s3 = inlined_call_operand.vmem [shape: bf16[128,128], index: 3, kind: input, shape index: {}]
  %s4 = inlined_call_operand.vmem [shape: bf16[128,128], index: 4, kind: output, shape index: {}]
  %s5 = sld [smem:[#allocation0]]
  $region26: #{allset_block.2} parent=0
    _
  %s7 = ssub.s32 1, %s5
  %s8 = scalar_select 0, %s7, %s5
  // Predicated region
  $region2: #{allset_block.2} parent=0 // pred_check
    _
  $region3: #{allset_block.2} parent=0 // pred_check_branch
    %10 = sbr.rel (0) target = $region5
  $region4: #{allset_block.2} parent=0 // pred_region
    _
  $region5: #{allset_block.2} parent=0 // pred_fallthru
    _
  // Predicated region
  $region6: #{allset_block.2} parent=0 // pred_check
    _
  $region7: #{allset_block.2} parent=0 // pred_check_branch
    %12 = sbr.rel (0) target = $region9
  $region8: #{allset_block.2} parent=0 // pred_region
    _
  $region9: #{allset_block.2} parent=0 // pred_fallthru
    _
  // Predicated region
  $region10: #{allset_block.2} parent=0 // pred_check
    _
  $region11: #{allset_block.2} parent=0 // pred_check_branch
    %14 = sbr.rel (0) target = $region13
  $region12: #{allset_block.2} parent=0 // pred_region
    _
  $region13: #{allset_block.2} parent=0 // pred_fallthru
    _
  // Predicated region
  $region14: #{allset_block.2} parent=0 // pred_check
    _
  $region15: #{allset_block.2} parent=0 // pred_check_branch
    %16 = sbr.rel (0) target = $region17
  $region16: #{allset_block.2} parent=0 // pred_region
    _
  $region17: #{allset_block.2} parent=0 // pred_fallthru
    _
  %v18 = vld [vmem:[%s0] sm:$0xf]
  %v19 = vld [vmem:[%s0 + $0x4] sm:$0xf]
  %v20 = vld [vmem:[%s0 + $0x8] sm:$0xf]
  %v21 = vld [vmem:[%s0 + $0xc] sm:$0xf]
  %v22 = vld [vmem:[%s0 + $0x10] sm:$0xf]
  %v23 = vld [vmem:[%s0 + $0x14] sm:$0xf]
  %v24 = vld [vmem:[%s0 + $0x18] sm:$0xf]
  %v25 = vld [vmem:[%s0 + $0x1c] sm:$0xf]
  %v26 = vld [vmem:[%s0 + $0x20] sm:$0xf]
  %v27 = vld [vmem:[%s0 + $0x24] sm:$0xf]
  %v28 = vld [vmem:[%s0 + $0x28] sm:$0xf]
  %v29 = vld [vmem:[%s0 + $0x2c] sm:$0xf]
  %v30 = vld [vmem:[%s0 + $0x30] sm:$0xf]
  %v31 = vld [vmem:[%s0 + $0x34] sm:$0xf]
  %v32 = vld [vmem:[%s0 + $0x38] sm:$0xf]
  %v33 = vld [vmem:[%s0 + $0x3c] sm:$0xf]
  %v34 = vld [vmem:[%s1] sm:$0xf]
  %v35 = vld [vmem:[%s1 + $0x4] sm:$0xf]
  %v36 = vld [vmem:[%s1 + $0x8] sm:$0xf]
  %v37 = vld [vmem:[%s1 + $0xc] sm:$0xf]
  %v38 = vld [vmem:[%s1 + $0x10] sm:$0xf]
  %v39 = vld [vmem:[%s1 + $0x14] sm:$0xf]
  %v40 = vld [vmem:[%s1 + $0x18] sm:$0xf]
  %v41 = vld [vmem:[%s1 + $0x1c] sm:$0xf]
  %v42 = vld [vmem:[%s1 + $0x20] sm:$0xf]
  %v43 = vld [vmem:[%s1 + $0x24] sm:$0xf]
  %v44 = vld [vmem:[%s1 + $0x28] sm:$0xf]
  %v45 = vld [vmem:[%s1 + $0x2c] sm:$0xf]
  %v46 = vld [vmem:[%s1 + $0x30] sm:$0xf]
  %v47 = vld [vmem:[%s1 + $0x34] sm:$0xf]
  %v48 = vld [vmem:[%s1 + $0x38] sm:$0xf]
  %v49 = vld [vmem:[%s1 + $0x3c] sm:$0xf]
  %v66 = vunpack.c.l.b16 %v18
  %v67 = vunpack.c.l.b16 %v19
  %v68 = vunpack.c.l.b16 %v20
  %v69 = vunpack.c.l.b16 %v21
  %v70 = vunpack.c.l.b16 %v22
  %v71 = vunpack.c.l.b16 %v23
  %v72 = vunpack.c.l.b16 %v24
  %v73 = vunpack.c.l.b16 %v25
  %v74 = vunpack.c.l.b16 %v26
  %v75 = vunpack.c.l.b16 %v27
  %v76 = vunpack.c.l.b16 %v28
  %v77 = vunpack.c.l.b16 %v29
  %v78 = vunpack.c.l.b16 %v30
  %v79 = vunpack.c.l.b16 %v31
  %v80 = vunpack.c.l.b16 %v32
  %v81 = vunpack.c.l.b16 %v33
  %v82 = vpack.c.b16 %v67, %v66
  %v83 = vpack.c.b16 %v69, %v68
  %v84 = vpack.c.b16 %v71, %v70
  %v85 = vpack.c.b16 %v73, %v72
  %v86 = vpack.c.b16 %v75, %v74
  %v87 = vpack.c.b16 %v77, %v76
  %v88 = vpack.c.b16 %v79, %v78
  %v89 = vpack.c.b16 %v81, %v80
  %v114 = vunpack.c.l.b16 %v34
  %v115 = vunpack.c.l.b16 %v35
  %v116 = vunpack.c.l.b16 %v36
  %v117 = vunpack.c.l.b16 %v37
  %v118 = vunpack.c.l.b16 %v38
  %v119 = vunpack.c.l.b16 %v39
  %v120 = vunpack.c.l.b16 %v40
  %v121 = vunpack.c.l.b16 %v41
  %v122 = vunpack.c.l.b16 %v42
  %v123 = vunpack.c.l.b16 %v43
  %v124 = vunpack.c.l.b16 %v44
  %v125 = vunpack.c.l.b16 %v45
  %v126 = vunpack.c.l.b16 %v46
  %v127 = vunpack.c.l.b16 %v47
  %v128 = vunpack.c.l.b16 %v48
  %v129 = vunpack.c.l.b16 %v49
  %v130 = vpack.c.b16 %v115, %v114
  %v131 = vpack.c.b16 %v117, %v116
  %v132 = vpack.c.b16 %v119, %v118
  %v133 = vpack.c.b16 %v121, %v120
  %v134 = vpack.c.b16 %v123, %v122
  %v135 = vpack.c.b16 %v125, %v124
  %v136 = vpack.c.b16 %v127, %v126
  %v137 = vpack.c.b16 %v129, %v128
  %146 = vmatprep.subr.bf16.mxu0 0
  %147 = vmatpush1.bf16.msra.mxu0 %v137
  %148 = vmatprep.subr.bf16.mxu0 0
  %149 = vmatpush1.bf16.msra.mxu0 %v136
  %150 = vmatprep.subr.bf16.mxu0 0
  %151 = vmatpush1.bf16.msra.mxu0 %v135
  %152 = vmatprep.subr.bf16.mxu0 0
  %153 = vmatpush1.bf16.msra.mxu0 %v134
  %154 = vmatprep.subr.bf16.mxu0 0
  %155 = vmatpush1.bf16.msra.mxu0 %v133
  %156 = vmatprep.subr.bf16.mxu0 0
  %157 = vmatpush1.bf16.msra.mxu0 %v132
  %158 = vmatprep.subr.bf16.mxu0 0
  %159 = vmatpush1.bf16.msra.mxu0 %v131
  %160 = vmatprep.subr.bf16.mxu0 0
  %161 = vmatpush1.bf16.msra.mxu0 %v130
  %162 = vmatprep.subr.bf16.mxu0 0
  %163 = vmatpush2.bf16.msra.mxu0 0
  %164 = vmatprep.subr.bf16.mxu0 0
  %165 = vmatpush2.bf16.msra.mxu0 0
  %166 = vmatprep.subr.bf16.mxu0 0
  %167 = vmatpush2.bf16.msra.mxu0 0
  %168 = vmatprep.subr.bf16.mxu0 0
  %169 = vmatpush2.bf16.msra.mxu0 0
  %170 = vmatprep.subr.bf16.mxu0 0
  %171 = vmatpush2.bf16.msra.mxu0 0
  %172 = vmatprep.subr.bf16.mxu0 0
  %173 = vmatpush2.bf16.msra.mxu0 0
  %174 = vmatprep.subr.bf16.mxu0 0
  %175 = vmatpush2.bf16.msra.mxu0 0
  %176 = vmatprep.subr.bf16.mxu0 0
  %177 = vmatpush2.bf16.msra.mxu0 0
  %178 = vmatprep.mubr.bf16.mxu0 0
  %179 = vmatmul.mubr.bf16.gmra.mxu0 %v82
  %v180 = vpop.f32.mrf.mxu0
  %v181 = vadd.f32 0.0, %v180
  %v182 = vpop.f32.mrf.mxu0
  %v183 = vpop.f32.mrf.mxu0
  %v184 = vadd.f32 0.0, %v183
  %v185 = vpop.f32.mrf.mxu0
  %186 = vmatprep.mubr.bf16.mxu0 0
  %187 = vmatmul.mubr.bf16.gmra.mxu0 %v83
  %v188 = vpop.f32.mrf.mxu0
  %v189 = vadd.f32 0.0, %v188
  %v190 = vpop.f32.mrf.mxu0
  %v191 = vpop.f32.mrf.mxu0
  %v192 = vadd.f32 0.0, %v191
  %v193 = vpop.f32.mrf.mxu0
  %194 = vmatprep.mubr.bf16.mxu0 0
  %195 = vmatmul.mubr.bf16.gmra.mxu0 %v84
  %v196 = vpop.f32.mrf.mxu0
  %v197 = vadd.f32 0.0, %v196
  %v198 = vpop.f32.mrf.mxu0
  %v199 = vpop.f32.mrf.mxu0
  %v200 = vadd.f32 0.0, %v199
  %v201 = vpop.f32.mrf.mxu0
  %202 = vmatprep.mubr.bf16.mxu0 0
  %203 = vmatmul.mubr.bf16.gmra.mxu0 %v85
  %v204 = vpop.f32.mrf.mxu0
  %v205 = vadd.f32 0.0, %v204
  %v206 = vpop.f32.mrf.mxu0
  %v207 = vpop.f32.mrf.mxu0
  %v208 = vadd.f32 0.0, %v207
  %v209 = vpop.f32.mrf.mxu0
  %210 = vmatprep.mubr.bf16.mxu0 0
  %211 = vmatmul.mubr.bf16.gmra.mxu0 %v86
  %v212 = vpop.f32.mrf.mxu0
  %v213 = vadd.f32 0.0, %v212
  %v214 = vpop.f32.mrf.mxu0
  %v215 = vpop.f32.mrf.mxu0
  %v216 = vadd.f32 0.0, %v215
  %v217 = vpop.f32.mrf.mxu0
  %218 = vmatprep.mubr.bf16.mxu0 0
  %219 = vmatmul.mubr.bf16.gmra.mxu0 %v87
  %v220 = vpop.f32.mrf.mxu0
  %v221 = vadd.f32 0.0, %v220
  %v222 = vpop.f32.mrf.mxu0
  %v223 = vpop.f32.mrf.mxu0
  %v224 = vadd.f32 0.0, %v223
  %v225 = vpop.f32.mrf.mxu0
  %226 = vmatprep.mubr.bf16.mxu0 0
  %227 = vmatmul.mubr.bf16.gmra.mxu0 %v88
  %v228 = vpop.f32.mrf.mxu0
  %v229 = vadd.f32 0.0, %v228
  %v230 = vpop.f32.mrf.mxu0
  %v231 = vpop.f32.mrf.mxu0
  %v232 = vadd.f32 0.0, %v231
  %v233 = vpop.f32.mrf.mxu0
  %234 = vmatprep.mubr.bf16.mxu0 0
  %235 = vmatmul.mubr.bf16.gmra.mxu0 %v89
  %v236 = vpop.f32.mrf.mxu0
  %v237 = vadd.f32 0.0, %v236
  %v238 = vpop.f32.mrf.mxu0
  %v239 = vpop.f32.mrf.mxu0
  %v240 = vadd.f32 0.0, %v239
  %v241 = vpop.f32.mrf.mxu0
  %242 = vdwg.mxu0
  %v243 = vmax.f32 %v181, 0.0
  %v244 = vmax.f32 %v184, 0.0
  %v245 = vmax.f32 %v189, 0.0
  %v246 = vmax.f32 %v192, 0.0
  %v247 = vmax.f32 %v197, 0.0
  %v248 = vmax.f32 %v200, 0.0
  %v249 = vmax.f32 %v205, 0.0
  %v250 = vmax.f32 %v208, 0.0
  %v251 = vmax.f32 %v213, 0.0
  %v252 = vmax.f32 %v216, 0.0
  %v253 = vmax.f32 %v221, 0.0
  %v254 = vmax.f32 %v224, 0.0
  %v255 = vmax.f32 %v229, 0.0
  %v256 = vmax.f32 %v232, 0.0
  %v257 = vmax.f32 %v237, 0.0
  %v258 = vmax.f32 %v240, 0.0
  %v259 = vpack.c.bf16 %v244, %v243
  %v260 = vpack.c.bf16 %v246, %v245
  %v261 = vpack.c.bf16 %v248, %v247
  %v262 = vpack.c.bf16 %v250, %v249
  %v263 = vpack.c.bf16 %v252, %v251
  %v264 = vpack.c.bf16 %v254, %v253
  %v265 = vpack.c.bf16 %v256, %v255
  %v266 = vpack.c.bf16 %v258, %v257
  %v267 = vld [vmem:[%s2] sm:$0xf]
  %v268 = vld [vmem:[%s2 + $0x4] sm:$0xf]
  %v269 = vld [vmem:[%s2 + $0x8] sm:$0xf]
  %v270 = vld [vmem:[%s2 + $0xc] sm:$0xf]
  %v271 = vld [vmem:[%s2 + $0x10] sm:$0xf]
  %v272 = vld [vmem:[%s2 + $0x14] sm:$0xf]
  %v273 = vld [vmem:[%s2 + $0x18] sm:$0xf]
  %v274 = vld [vmem:[%s2 + $0x1c] sm:$0xf]
  %v275 = vld [vmem:[%s2 + $0x20] sm:$0xf]
  %v276 = vld [vmem:[%s2 + $0x24] sm:$0xf]
  %v277 = vld [vmem:[%s2 + $0x28] sm:$0xf]
  %v278 = vld [vmem:[%s2 + $0x2c] sm:$0xf]
  %v279 = vld [vmem:[%s2 + $0x30] sm:$0xf]
  %v280 = vld [vmem:[%s2 + $0x34] sm:$0xf]
  %v281 = vld [vmem:[%s2 + $0x38] sm:$0xf]
  %v282 = vld [vmem:[%s2 + $0x3c] sm:$0xf]
  %v299 = vunpack.c.l.b16 %v267
  %v300 = vunpack.c.l.b16 %v268
  %v301 = vunpack.c.l.b16 %v269
  %v302 = vunpack.c.l.b16 %v270
  %v303 = vunpack.c.l.b16 %v271
  %v304 = vunpack.c.l.b16 %v272
  %v305 = vunpack.c.l.b16 %v273
  %v306 = vunpack.c.l.b16 %v274
  %v307 = vunpack.c.l.b16 %v275
  %v308 = vunpack.c.l.b16 %v276
  %v309 = vunpack.c.l.b16 %v277
  %v310 = vunpack.c.l.b16 %v278
  %v311 = vunpack.c.l.b16 %v279
  %v312 = vunpack.c.l.b16 %v280
  %v313 = vunpack.c.l.b16 %v281
  %v314 = vunpack.c.l.b16 %v282
  %v315 = vpack.c.b16 %v300, %v299
  %v316 = vpack.c.b16 %v302, %v301
  %v317 = vpack.c.b16 %v304, %v303
  %v318 = vpack.c.b16 %v306, %v305
  %v319 = vpack.c.b16 %v308, %v307
  %v320 = vpack.c.b16 %v310, %v309
  %v321 = vpack.c.b16 %v312, %v311
  %v322 = vpack.c.b16 %v314, %v313
  %331 = vmatprep.subr.bf16.mxu0 0
  %332 = vmatpush1.bf16.msra.mxu0 %v322
  %333 = vmatprep.subr.bf16.mxu0 0
  %334 = vmatpush1.bf16.msra.mxu0 %v321
  %335 = vmatprep.subr.bf16.mxu0 0
  %336 = vmatpush1.bf16.msra.mxu0 %v320
  %337 = vmatprep.subr.bf16.mxu0 0
  %338 = vmatpush1.bf16.msra.mxu0 %v319
  %339 = vmatprep.subr.bf16.mxu0 0
  %340 = vmatpush1.bf16.msra.mxu0 %v318
  %341 = vmatprep.subr.bf16.mxu0 0
  %342 = vmatpush1.bf16.msra.mxu0 %v317
  %343 = vmatprep.subr.bf16.mxu0 0
  %344 = vmatpush1.bf16.msra.mxu0 %v316
  %345 = vmatprep.subr.bf16.mxu0 0
  %346 = vmatpush1.bf16.msra.mxu0 %v315
  %347 = vmatprep.subr.bf16.mxu0 0
  %348 = vmatpush2.bf16.msra.mxu0 0
  %349 = vmatprep.subr.bf16.mxu0 0
  %350 = vmatpush2.bf16.msra.mxu0 0
  %351 = vmatprep.subr.bf16.mxu0 0
  %352 = vmatpush2.bf16.msra.mxu0 0
  %353 = vmatprep.subr.bf16.mxu0 0
  %354 = vmatpush2.bf16.msra.mxu0 0
  %355 = vmatprep.subr.bf16.mxu0 0
  %356 = vmatpush2.bf16.msra.mxu0 0
  %357 = vmatprep.subr.bf16.mxu0 0
  %358 = vmatpush2.bf16.msra.mxu0 0
  %359 = vmatprep.subr.bf16.mxu0 0
  %360 = vmatpush2.bf16.msra.mxu0 0
  %361 = vmatprep.subr.bf16.mxu0 0
  %362 = vmatpush2.bf16.msra.mxu0 0
  %363 = vmatprep.mubr.bf16.mxu0 0
  %364 = vmatmul.mubr.bf16.gmra.mxu0 %v259
  %v365 = vpop.f32.mrf.mxu0
  %v366 = vadd.f32 0.0, %v365
  %v367 = vpop.f32.mrf.mxu0
  %v368 = vpop.f32.mrf.mxu0
  %v369 = vadd.f32 0.0, %v368
  %v370 = vpop.f32.mrf.mxu0
  %371 = vmatprep.mubr.bf16.mxu0 0
  %372 = vmatmul.mubr.bf16.gmra.mxu0 %v260
  %v373 = vpop.f32.mrf.mxu0
  %v374 = vadd.f32 0.0, %v373
  %v375 = vpop.f32.mrf.mxu0
  %v376 = vpop.f32.mrf.mxu0
  %v377 = vadd.f32 0.0, %v376
  %v378 = vpop.f32.mrf.mxu0
  %379 = vmatprep.mubr.bf16.mxu0 0
  %380 = vmatmul.mubr.bf16.gmra.mxu0 %v261
  %v381 = vpop.f32.mrf.mxu0
  %v382 = vadd.f32 0.0, %v381
  %v383 = vpop.f32.mrf.mxu0
  %v384 = vpop.f32.mrf.mxu0
  %v385 = vadd.f32 0.0, %v384
  %v386 = vpop.f32.mrf.mxu0
  %387 = vmatprep.mubr.bf16.mxu0 0
  %388 = vmatmul.mubr.bf16.gmra.mxu0 %v262
  %v389 = vpop.f32.mrf.mxu0
  %v390 = vadd.f32 0.0, %v389
  %v391 = vpop.f32.mrf.mxu0
  %v392 = vpop.f32.mrf.mxu0
  %v393 = vadd.f32 0.0, %v392
  %v394 = vpop.f32.mrf.mxu0
  %395 = vmatprep.mubr.bf16.mxu0 0
  %396 = vmatmul.mubr.bf16.gmra.mxu0 %v263
  %v397 = vpop.f32.mrf.mxu0
  %v398 = vadd.f32 0.0, %v397
  %v399 = vpop.f32.mrf.mxu0
  %v400 = vpop.f32.mrf.mxu0
  %v401 = vadd.f32 0.0, %v400
  %v402 = vpop.f32.mrf.mxu0
  %403 = vmatprep.mubr.bf16.mxu0 0
  %404 = vmatmul.mubr.bf16.gmra.mxu0 %v264
  %v405 = vpop.f32.mrf.mxu0
  %v406 = vadd.f32 0.0, %v405
  %v407 = vpop.f32.mrf.mxu0
  %v408 = vpop.f32.mrf.mxu0
  %v409 = vadd.f32 0.0, %v408
  %v410 = vpop.f32.mrf.mxu0
  %411 = vmatprep.mubr.bf16.mxu0 0
  %412 = vmatmul.mubr.bf16.gmra.mxu0 %v265
  %v413 = vpop.f32.mrf.mxu0
  %v414 = vadd.f32 0.0, %v413
  %v415 = vpop.f32.mrf.mxu0
  %v416 = vpop.f32.mrf.mxu0
  %v417 = vadd.f32 0.0, %v416
  %v418 = vpop.f32.mrf.mxu0
  %419 = vmatprep.mubr.bf16.mxu0 0
  %420 = vmatmul.mubr.bf16.gmra.mxu0 %v266
  %v421 = vpop.f32.mrf.mxu0
  %v422 = vadd.f32 0.0, %v421
  %v423 = vpop.f32.mrf.mxu0
  %v424 = vpop.f32.mrf.mxu0
  %v425 = vadd.f32 0.0, %v424
  %v426 = vpop.f32.mrf.mxu0
  %427 = vdwg.mxu0
  %v428 = vmax.f32 %v366, 0.0
  %v429 = vmax.f32 %v369, 0.0
  %v430 = vmax.f32 %v374, 0.0
  %v431 = vmax.f32 %v377, 0.0
  %v432 = vmax.f32 %v382, 0.0
  %v433 = vmax.f32 %v385, 0.0
  %v434 = vmax.f32 %v390, 0.0
  %v435 = vmax.f32 %v393, 0.0
  %v436 = vmax.f32 %v398, 0.0
  %v437 = vmax.f32 %v401, 0.0
  %v438 = vmax.f32 %v406, 0.0
  %v439 = vmax.f32 %v409, 0.0
  %v440 = vmax.f32 %v414, 0.0
  %v441 = vmax.f32 %v417, 0.0
  %v442 = vmax.f32 %v422, 0.0
  %v443 = vmax.f32 %v425, 0.0
  %v444 = vpack.c.bf16 %v429, %v428
  %v445 = vpack.c.bf16 %v431, %v430
  %v446 = vpack.c.bf16 %v433, %v432
  %v447 = vpack.c.bf16 %v435, %v434
  %v448 = vpack.c.bf16 %v437, %v436
  %v449 = vpack.c.bf16 %v439, %v438
  %v450 = vpack.c.bf16 %v441, %v440
  %v451 = vpack.c.bf16 %v443, %v442
  %v452 = vld [vmem:[%s3] sm:$0xf]
  %v453 = vld [vmem:[%s3 + $0x4] sm:$0xf]
  %v454 = vld [vmem:[%s3 + $0x8] sm:$0xf]
  %v455 = vld [vmem:[%s3 + $0xc] sm:$0xf]
  %v456 = vld [vmem:[%s3 + $0x10] sm:$0xf]
  %v457 = vld [vmem:[%s3 + $0x14] sm:$0xf]
  %v458 = vld [vmem:[%s3 + $0x18] sm:$0xf]
  %v459 = vld [vmem:[%s3 + $0x1c] sm:$0xf]
  %v460 = vld [vmem:[%s3 + $0x20] sm:$0xf]
  %v461 = vld [vmem:[%s3 + $0x24] sm:$0xf]
  %v462 = vld [vmem:[%s3 + $0x28] sm:$0xf]
  %v463 = vld [vmem:[%s3 + $0x2c] sm:$0xf]
  %v464 = vld [vmem:[%s3 + $0x30] sm:$0xf]
  %v465 = vld [vmem:[%s3 + $0x34] sm:$0xf]
  %v466 = vld [vmem:[%s3 + $0x38] sm:$0xf]
  %v467 = vld [vmem:[%s3 + $0x3c] sm:$0xf]
  %v484 = vunpack.c.l.b16 %v452
  %v485 = vunpack.c.l.b16 %v453
  %v486 = vunpack.c.l.b16 %v454
  %v487 = vunpack.c.l.b16 %v455
  %v488 = vunpack.c.l.b16 %v456
  %v489 = vunpack.c.l.b16 %v457
  %v490 = vunpack.c.l.b16 %v458
  %v491 = vunpack.c.l.b16 %v459
  %v492 = vunpack.c.l.b16 %v460
  %v493 = vunpack.c.l.b16 %v461
  %v494 = vunpack.c.l.b16 %v462
  %v495 = vunpack.c.l.b16 %v463
  %v496 = vunpack.c.l.b16 %v464
  %v497 = vunpack.c.l.b16 %v465
  %v498 = vunpack.c.l.b16 %v466
  %v499 = vunpack.c.l.b16 %v467
  %v500 = vpack.c.b16 %v485, %v484
  %v501 = vpack.c.b16 %v487, %v486
  %v502 = vpack.c.b16 %v489, %v488
  %v503 = vpack.c.b16 %v491, %v490
  %v504 = vpack.c.b16 %v493, %v492
  %v505 = vpack.c.b16 %v495, %v494
  %v506 = vpack.c.b16 %v497, %v496
  %v507 = vpack.c.b16 %v499, %v498
  %516 = vmatprep.subr.bf16.mxu0 0
  %517 = vmatpush1.bf16.msra.mxu0 %v507
  %518 = vmatprep.subr.bf16.mxu0 0
  %519 = vmatpush1.bf16.msra.mxu0 %v506
  %520 = vmatprep.subr.bf16.mxu0 0
  %521 = vmatpush1.bf16.msra.mxu0 %v505
  %522 = vmatprep.subr.bf16.mxu0 0
  %523 = vmatpush1.bf16.msra.mxu0 %v504
  %524 = vmatprep.subr.bf16.mxu0 0
  %525 = vmatpush1.bf16.msra.mxu0 %v503
  %526 = vmatprep.subr.bf16.mxu0 0
  %527 = vmatpush1.bf16.msra.mxu0 %v502
  %528 = vmatprep.subr.bf16.mxu0 0
  %529 = vmatpush1.bf16.msra.mxu0 %v501
  %530 = vmatprep.subr.bf16.mxu0 0
  %531 = vmatpush1.bf16.msra.mxu0 %v500
  %532 = vmatprep.subr.bf16.mxu0 0
  %533 = vmatpush2.bf16.msra.mxu0 0
  %534 = vmatprep.subr.bf16.mxu0 0
  %535 = vmatpush2.bf16.msra.mxu0 0
  %536 = vmatprep.subr.bf16.mxu0 0
  %537 = vmatpush2.bf16.msra.mxu0 0
  %538 = vmatprep.subr.bf16.mxu0 0
  %539 = vmatpush2.bf16.msra.mxu0 0
  %540 = vmatprep.subr.bf16.mxu0 0
  %541 = vmatpush2.bf16.msra.mxu0 0
  %542 = vmatprep.subr.bf16.mxu0 0
  %543 = vmatpush2.bf16.msra.mxu0 0
  %544 = vmatprep.subr.bf16.mxu0 0
  %545 = vmatpush2.bf16.msra.mxu0 0
  %546 = vmatprep.subr.bf16.mxu0 0
  %547 = vmatpush2.bf16.msra.mxu0 0
  %548 = vmatprep.mubr.bf16.mxu0 0
  %549 = vmatmul.mubr.bf16.gmra.mxu0 %v444
  %v550 = vpop.f32.mrf.mxu0
  %v551 = vadd.f32 0.0, %v550
  %v552 = vpop.f32.mrf.mxu0
  %v553 = vpop.f32.mrf.mxu0
  %v554 = vadd.f32 0.0, %v553
  %v555 = vpop.f32.mrf.mxu0
  %556 = vmatprep.mubr.bf16.mxu0 0
  %557 = vmatmul.mubr.bf16.gmra.mxu0 %v445
  %v558 = vpop.f32.mrf.mxu0
  %v559 = vadd.f32 0.0, %v558
  %v560 = vpop.f32.mrf.mxu0
  %v561 = vpop.f32.mrf.mxu0
  %v562 = vadd.f32 0.0, %v561
  %v563 = vpop.f32.mrf.mxu0
  %564 = vmatprep.mubr.bf16.mxu0 0
  %565 = vmatmul.mubr.bf16.gmra.mxu0 %v446
  %v566 = vpop.f32.mrf.mxu0
  %v567 = vadd.f32 0.0, %v566
  %v568 = vpop.f32.mrf.mxu0
  %v569 = vpop.f32.mrf.mxu0
  %v570 = vadd.f32 0.0, %v569
  %v571 = vpop.f32.mrf.mxu0
  %572 = vmatprep.mubr.bf16.mxu0 0
  %573 = vmatmul.mubr.bf16.gmra.mxu0 %v447
  %v574 = vpop.f32.mrf.mxu0
  %v575 = vadd.f32 0.0, %v574
  %v576 = vpop.f32.mrf.mxu0
  %v577 = vpop.f32.mrf.mxu0
  %v578 = vadd.f32 0.0, %v577
  %v579 = vpop.f32.mrf.mxu0
  %580 = vmatprep.mubr.bf16.mxu0 0
  %581 = vmatmul.mubr.bf16.gmra.mxu0 %v448
  %v582 = vpop.f32.mrf.mxu0
  %v583 = vadd.f32 0.0, %v582
  %v584 = vpop.f32.mrf.mxu0
  %v585 = vpop.f32.mrf.mxu0
  %v586 = vadd.f32 0.0, %v585
  %v587 = vpop.f32.mrf.mxu0
  %588 = vmatprep.mubr.bf16.mxu0 0
  %589 = vmatmul.mubr.bf16.gmra.mxu0 %v449
  %v590 = vpop.f32.mrf.mxu0
  %v591 = vadd.f32 0.0, %v590
  %v592 = vpop.f32.mrf.mxu0
  %v593 = vpop.f32.mrf.mxu0
  %v594 = vadd.f32 0.0, %v593
  %v595 = vpop.f32.mrf.mxu0
  %596 = vmatprep.mubr.bf16.mxu0 0
  %597 = vmatmul.mubr.bf16.gmra.mxu0 %v450
  %v598 = vpop.f32.mrf.mxu0
  %v599 = vadd.f32 0.0, %v598
  %v600 = vpop.f32.mrf.mxu0
  %v601 = vpop.f32.mrf.mxu0
  %v602 = vadd.f32 0.0, %v601
  %v603 = vpop.f32.mrf.mxu0
  %604 = vmatprep.mubr.bf16.mxu0 0
  %605 = vmatmul.mubr.bf16.gmra.mxu0 %v451
  %v606 = vpop.f32.mrf.mxu0
  %v607 = vadd.f32 0.0, %v606
  %v608 = vpop.f32.mrf.mxu0
  %v609 = vpop.f32.mrf.mxu0
  %v610 = vadd.f32 0.0, %v609
  %v611 = vpop.f32.mrf.mxu0
  %612 = vdwg.mxu0
  %v613 = vpack.c.bf16 %v554, %v551
  %v614 = vpack.c.bf16 %v562, %v559
  %v615 = vpack.c.bf16 %v570, %v567
  %v616 = vpack.c.bf16 %v578, %v575
  %v617 = vpack.c.bf16 %v586, %v583
  %v618 = vpack.c.bf16 %v594, %v591
  %v619 = vpack.c.bf16 %v602, %v599
  %v620 = vpack.c.bf16 %v610, %v607
  %v629 = vunpack.c.l.b16 %v613
  %v630 = vunpack.c.h.b16 %v613
  %v631 = vunpack.c.l.b16 %v614
  %v632 = vunpack.c.h.b16 %v614
  %v633 = vunpack.c.l.b16 %v615
  %v634 = vunpack.c.h.b16 %v615
  %v635 = vunpack.c.l.b16 %v616
  %v636 = vunpack.c.h.b16 %v616
  %v637 = vunpack.c.l.b16 %v617
  %v638 = vunpack.c.h.b16 %v617
  %v639 = vunpack.c.l.b16 %v618
  %v640 = vunpack.c.h.b16 %v618
  %v641 = vunpack.c.l.b16 %v619
  %v642 = vunpack.c.h.b16 %v619
  %v643 = vunpack.c.l.b16 %v620
  %v644 = vunpack.c.h.b16 %v620
  %v645 = vpack.c.b16 %v629, %v629
  %v646 = vpack.c.b16 %v630, %v630
  %v647 = vpack.c.b16 %v631, %v631
  %v648 = vpack.c.b16 %v632, %v632
  %v649 = vpack.c.b16 %v633, %v633
  %v650 = vpack.c.b16 %v634, %v634
  %v651 = vpack.c.b16 %v635, %v635
  %v652 = vpack.c.b16 %v636, %v636
  %v653 = vpack.c.b16 %v637, %v637
  %v654 = vpack.c.b16 %v638, %v638
  %v655 = vpack.c.b16 %v639, %v639
  %v656 = vpack.c.b16 %v640, %v640
  %v657 = vpack.c.b16 %v641, %v641
  %v658 = vpack.c.b16 %v642, %v642
  %v659 = vpack.c.b16 %v643, %v643
  %v660 = vpack.c.b16 %v644, %v644
  %677 = vst [vmem:[%s4] sm:$0xf] %v645
  %678 = vst [vmem:[%s4 + $0x4] sm:$0xf] %v646
  %679 = vst [vmem:[%s4 + $0x8] sm:$0xf] %v647
  %680 = vst [vmem:[%s4 + $0xc] sm:$0xf] %v648
  %681 = vst [vmem:[%s4 + $0x10] sm:$0xf] %v649
  %682 = vst [vmem:[%s4 + $0x14] sm:$0xf] %v650
  %683 = vst [vmem:[%s4 + $0x18] sm:$0xf] %v651
  %684 = vst [vmem:[%s4 + $0x1c] sm:$0xf] %v652
  %685 = vst [vmem:[%s4 + $0x20] sm:$0xf] %v653
  %686 = vst [vmem:[%s4 + $0x24] sm:$0xf] %v654
  %687 = vst [vmem:[%s4 + $0x28] sm:$0xf] %v655
  %688 = vst [vmem:[%s4 + $0x2c] sm:$0xf] %v656
  %689 = vst [vmem:[%s4 + $0x30] sm:$0xf] %v657
  %690 = vst [vmem:[%s4 + $0x34] sm:$0xf] %v658
  %691 = vst [vmem:[%s4 + $0x38] sm:$0xf] %v659
  %692 = vst [vmem:[%s4 + $0x3c] sm:$0xf] %v660
  // Predicated region
  $region18: #{allset_block.2} parent=0 // pred_check
    _
  $region19: #{allset_block.2} parent=0 // pred_check_branch
    %694 = sbr.rel (0) target = $region21
  $region20: #{allset_block.2} parent=0 // pred_region
    _
  $region21: #{allset_block.2} parent=0 // pred_fallthru
    _
  // Predicated region
  $region22: #{allset_block.2} parent=0 // pred_check
    _
  $region23: #{allset_block.2} parent=0 // pred_check_branch
    %696 = sbr.rel (0) target = $region25
  $region24: #{allset_block.2} parent=0 // pred_region
    _
  $region25: #{allset_block.2} parent=0 // pred_fallthru
    _

</llo_original>
